<compile_context>
chip_gen: v7x
topology: tpu7x:2x2x1
jax: 0.10.0
libtpu: 0.0.40
codegen_flags: <defaults>
</compile_context>

<pallas_src>
import jax
import jax.numpy as jnp
from jax.experimental import pallas as pl
from jax.experimental.pallas import tpu as pltpu

_F32 = jnp.float32
_ITEMSIZE = 4  # all params/activations kept in f32 for this test


def _make_fused_mlp_kernel(num_layers: int):
    """Kernel args: (x_ref, w0_ref, b0_ref, ..., w{L-1}_ref, b{L-1}_ref, o_ref)."""

    def kernel(x_ref, *refs):
        o_ref = refs[-1]
        wb_refs = refs[:-1]
        h = x_ref[...].astype(_F32)
        for i in range(num_layers):
            w = wb_refs[2 * i][...].astype(_F32)
            b = wb_refs[2 * i + 1][...]  # (1, fout) -> broadcasts over batch rows
            h = jnp.dot(h, w, preferred_element_type=_F32) + b
            if i < num_layers - 1:
                # SiLU = y * sigmoid(y); exp + approx reciprocal both run on the EUP slot,
                # leaving the VALU free. (approx recip => compare with ~1e-3 tolerance.)
                h = h * pl.reciprocal(1.0 + jnp.exp(-h), approx=True)
        o_ref[...] = h.astype(o_ref.dtype)

    return kernel


def _pick_batch_tile(B, latent_dim, num_modulations, act_budget_bytes=16 << 20):
    """Largest batch tile (multiple of 8, dividing B) whose double-buffered in/out tiles
    plus in-flight intermediates fit a conservative activation budget (v7x: 64 MiB VMEM)."""
    per_row = (2 * (latent_dim + num_modulations)          # double-buffered x/out tiles
               + 4 * max(latent_dim, num_modulations)) * _ITEMSIZE  # live intermediates
    max_tb = max(8, act_budget_bytes // max(per_row, 1))
    if B <= max_tb:
        return B
    for tb in range((max_tb // 8) * 8, 7, -8):
        if B % tb == 0:
            return tb
    return B  # no nice divisor: fall back to a single block


def _estimate_vmem_bytes(TB, layer_dims):
    fin0 = layer_dims[0][0]
    fout_last = layer_dims[-1][1]
    act = 2 * TB * (fin0 + fout_last) * _ITEMSIZE              # double-buffered in/out tiles
    weights = sum(2 * (fi * fo + fo) * _ITEMSIZE for fi, fo in layer_dims)
    hidden = 4 * TB * max(fo for _, fo in layer_dims) * _ITEMSIZE
    return act + weights + hidden


def latent_to_modulation_forward(latent, params, *, batch_tile=None):
    """latent: (B, latent_dim) -> (B, num_modulations). Fused single-kernel MLP forward."""
    B, latent_dim = latent.shape
    num_layers = len(params)
    num_modulations = params[-1][0].shape[1]
    layer_dims = [(w.shape[0], w.shape[1]) for (w, _) in params]

    TB = batch_tile if batch_tile is not None else _pick_batch_tile(
        B, latent_dim, num_modulations)
    grid = (pl.cdiv(B, TB),)

    # Inputs: batch-tiled latent, then per-layer (W, b) with constant index_maps
    # (weights/biases stay VMEM-resident across grid steps).
    in_specs = [pl.BlockSpec((TB, latent_dim), lambda i: (i, 0))]
    flat_inputs = [latent]
    for (w, b) in params:
        fin, fout = w.shape
        in_specs.append(pl.BlockSpec((fin, fout), lambda i: (0, 0)))
        in_specs.append(pl.BlockSpec((1, fout), lambda i: (0, 0)))
        flat_inputs.append(w)
        flat_inputs.append(b.reshape(1, fout))

    out_specs = pl.BlockSpec((TB, num_modulations), lambda i: (i, 0))

    vmem_limit = int(min(64 << 20, max(4 * _estimate_vmem_bytes(TB, layer_dims), 32 << 20)))

    return pl.pallas_call(
        _make_fused_mlp_kernel(num_layers),
        out_shape=jax.ShapeDtypeStruct((B, num_modulations), latent.dtype),
        grid=grid,
        in_specs=in_specs,
        out_specs=out_specs,
        compiler_params=pltpu.CompilerParams(
            dimension_semantics=("parallel",),   # batch blocks are independent
            vmem_limit_bytes=vmem_limit,
        ),
    )(*flat_inputs)


def init_latent_to_modulation_params(key, latent_dim, num_modulations,
                                     dim_hidden, num_layers, dtype=_F32):
    """Deterministic synthetic params. Each entry: (W of shape (in,out), b of shape (out,))."""
    params = []
    if num_layers == 1:
        dims = [(latent_dim, num_modulations)]
    else:
        dims = [(latent_dim, dim_hidden)]
        dims += [(dim_hidden, dim_hidden)] * max(0, num_layers - 2)
        dims += [(dim_hidden, num_modulations)]
    for (fin, fout) in dims:
        key, kw, kb = jax.random.split(key, 3)
        scale = 1.0 / jnp.sqrt(jnp.asarray(fin, dtype))
        w = jax.random.uniform(kw, (fin, fout), dtype, -scale, scale)
        b = jax.random.uniform(kb, (fout,), dtype, -scale, scale)
        params.append((w, b))
    return params


def _reference_forward(latent, params):
    x = latent
    n = len(params)
    for i, (w, b) in enumerate(params):
        x = x @ w + b
        if i < n - 1:
            x = x * jax.nn.sigmoid(x)
    return x


if __name__ == "__main__":
    latent_dim = 32
    num_modulations = 128
    dim_hidden = 64
    num_layers = 3
    batch = 8

    key = jax.random.PRNGKey(0)
    key_p, key_x = jax.random.split(key)
    params = init_latent_to_modulation_params(
        key_p, latent_dim, num_modulations, dim_hidden, num_layers)
    latent = jax.random.normal(key_x, (batch, latent_dim), _F32)

    out = latent_to_modulation_forward(latent, params)
    out = jax.block_until_ready(out)

    ref = _reference_forward(latent, params)
    assert out.shape == (batch, num_modulations)
    # Tolerance accounts for the EUP approximate-reciprocal in SiLU (matmuls accumulate in f32).
    assert jnp.allclose(out, ref, atol=2e-3, rtol=2e-3), float(jnp.max(jnp.abs(out - ref)))

    print("KERNEL_OK")
</pallas_src>

<mosaic_0001>
module attributes {stable_mosaic.version = 11 : i64} {
  func.func @kernel(%arg0: i32, %arg1: memref<8x32xf32, #tpu.memory_space<vmem>>, %arg2: memref<32x64xf32, #tpu.memory_space<vmem>>, %arg3: memref<1x64xf32, #tpu.memory_space<vmem>>, %arg4: memref<64x64xf32, #tpu.memory_space<vmem>>, %arg5: memref<1x64xf32, #tpu.memory_space<vmem>>, %arg6: memref<64x128xf32, #tpu.memory_space<vmem>>, %arg7: memref<1x128xf32, #tpu.memory_space<vmem>>, %arg8: memref<8x128xf32, #tpu.memory_space<vmem>>) attributes {dimension_semantics = [#tpu.dimension_semantics<parallel>], iteration_bounds = array<i64: 1>, scalar_prefetch = 0 : i64, scratch_operands = 0 : i64, tpu.core_type = #tpu.core_type<tc>, window_params = [{transform_indices = @transform_0, window_bounds = array<i64: 8, 32>}, {pipeline_mode = #tpu.pipeline_mode<synchronous>, transform_indices = @transform_1, window_bounds = array<i64: 32, 64>}, {pipeline_mode = #tpu.pipeline_mode<synchronous>, transform_indices = @transform_2, window_bounds = array<i64: 1, 64>}, {pipeline_mode = #tpu.pipeline_mode<synchronous>, transform_indices = @transform_3, window_bounds = array<i64: 64, 64>}, {pipeline_mode = #tpu.pipeline_mode<synchronous>, transform_indices = @transform_4, window_bounds = array<i64: 1, 64>}, {pipeline_mode = #tpu.pipeline_mode<synchronous>, transform_indices = @transform_5, window_bounds = array<i64: 64, 128>}, {pipeline_mode = #tpu.pipeline_mode<synchronous>, transform_indices = @transform_6, window_bounds = array<i64: 1, 128>}, {transform_indices = @transform_7, window_bounds = array<i64: 8, 128>}]} {
    %c0 = arith.constant 0 : index
    %c0_0 = arith.constant 0 : index
    %0 = vector.load %arg1[%c0, %c0_0] : memref<8x32xf32, #tpu.memory_space<vmem>>, vector<8x32xf32>
    %c0_1 = arith.constant 0 : index
    %c0_2 = arith.constant 0 : index
    %1 = vector.load %arg2[%c0_1, %c0_2] : memref<32x64xf32, #tpu.memory_space<vmem>>, vector<32x64xf32>
    %c0_3 = arith.constant 0 : index
    %c0_4 = arith.constant 0 : index
    %2 = vector.load %arg3[%c0_3, %c0_4] : memref<1x64xf32, #tpu.memory_space<vmem>>, vector<1x64xf32>
    %cst = arith.constant dense<0.000000e+00> : vector<8x64xf32>
    %3 = tpu.matmul %0, %1, %cst {dimension_numbers = #tpu.dot_dimension_numbers<[1], [0], [0], [1], [0, 0, 1, 1], [], []>} : vector<8x32xf32>, vector<32x64xf32>, vector<8x64xf32> -> vector<8x64xf32>
    %4 = vector.broadcast %2 : vector<1x64xf32> to vector<8x64xf32>
    %5 = arith.addf %3, %4 : vector<8x64xf32>
    %cst_5 = arith.constant 0.000000e+00 : f32
    %6 = vector.broadcast %cst_5 : f32 to vector<8x64xf32>
    %7 = arith.subf %6, %5 : vector<8x64xf32>
    %8 = math.exp %7 : vector<8x64xf32>
    %cst_6 = arith.constant 1.000000e+00 : f32
    %9 = vector.broadcast %cst_6 : f32 to vector<8x64xf32>
    %10 = arith.addf %9, %8 : vector<8x64xf32>
    %11 = tpu.reciprocal %10 {approx = true} : vector<8x64xf32> -> vector<8x64xf32>
    %12 = arith.mulf %5, %11 : vector<8x64xf32>
    %c0_7 = arith.constant 0 : index
    %c0_8 = arith.constant 0 : index
    %13 = vector.load %arg4[%c0_7, %c0_8] : memref<64x64xf32, #tpu.memory_space<vmem>>, vector<64x64xf32>
    %c0_9 = arith.constant 0 : index
    %c0_10 = arith.constant 0 : index
    %14 = vector.load %arg5[%c0_9, %c0_10] : memref<1x64xf32, #tpu.memory_space<vmem>>, vector<1x64xf32>
    %cst_11 = arith.constant dense<0.000000e+00> : vector<8x64xf32>
    %15 = tpu.matmul %12, %13, %cst_11 {dimension_numbers = #tpu.dot_dimension_numbers<[1], [0], [0], [1], [0, 0, 1, 1], [], []>} : vector<8x64xf32>, vector<64x64xf32>, vector<8x64xf32> -> vector<8x64xf32>
    %16 = vector.broadcast %14 : vector<1x64xf32> to vector<8x64xf32>
    %17 = arith.addf %15, %16 : vector<8x64xf32>
    %cst_12 = arith.constant 0.000000e+00 : f32
    %18 = vector.broadcast %cst_12 : f32 to vector<8x64xf32>
    %19 = arith.subf %18, %17 : vector<8x64xf32>
    %20 = math.exp %19 : vector<8x64xf32>
    %cst_13 = arith.constant 1.000000e+00 : f32
    %21 = vector.broadcast %cst_13 : f32 to vector<8x64xf32>
    %22 = arith.addf %21, %20 : vector<8x64xf32>
    %23 = tpu.reciprocal %22 {approx = true} : vector<8x64xf32> -> vector<8x64xf32>
    %24 = arith.mulf %17, %23 : vector<8x64xf32>
    %c0_14 = arith.constant 0 : index
    %c0_15 = arith.constant 0 : index
    %25 = vector.load %arg6[%c0_14, %c0_15] : memref<64x128xf32, #tpu.memory_space<vmem>>, vector<64x128xf32>
    %c0_16 = arith.constant 0 : index
    %c0_17 = arith.constant 0 : index
    %26 = vector.load %arg7[%c0_16, %c0_17] : memref<1x128xf32, #tpu.memory_space<vmem>>, vector<1x128xf32>
    %cst_18 = arith.constant dense<0.000000e+00> : vector<8x128xf32>
    %27 = tpu.matmul %24, %25, %cst_18 {dimension_numbers = #tpu.dot_dimension_numbers<[1], [0], [0], [1], [0, 0, 1, 1], [], []>} : vector<8x64xf32>, vector<64x128xf32>, vector<8x128xf32> -> vector<8x128xf32>
    %28 = vector.broadcast %26 : vector<1x128xf32> to vector<8x128xf32>
    %29 = arith.addf %27, %28 : vector<8x128xf32>
    %c0_19 = arith.constant 0 : index
    %c0_20 = arith.constant 0 : index
    %30 = vector.load %arg8[%c0_19, %c0_20] : memref<8x128xf32, #tpu.memory_space<vmem>>, vector<8x128xf32>
    tpu.vector_store %arg8[%c0_19, %c0_20], %29 {strides = array<i32>} : memref<8x128xf32, #tpu.memory_space<vmem>>, vector<8x128xf32>,
    return
  }
  func.func @transform_0(%arg0: i32) -> (i32, i32) {
    %c0_i32 = arith.constant 0 : i32
    %c0_i32_0 = arith.constant 0 : i32
    return %arg0, %c0_i32 : i32, i32
  }
  func.func @transform_1(%arg0: i32) -> (i32, i32) {
    %c0_i32 = arith.constant 0 : i32
    %c0_i32_0 = arith.constant 0 : i32
    %c0_i32_1 = arith.constant 0 : i32
    return %c0_i32, %c0_i32_0 : i32, i32
  }
  func.func @transform_2(%arg0: i32) -> (i32, i32) {
    %c0_i32 = arith.constant 0 : i32
    %c0_i32_0 = arith.constant 0 : i32
    %c0_i32_1 = arith.constant 0 : i32
    return %c0_i32, %c0_i32_0 : i32, i32
  }
  func.func @transform_3(%arg0: i32) -> (i32, i32) {
    %c0_i32 = arith.constant 0 : i32
    %c0_i32_0 = arith.constant 0 : i32
    %c0_i32_1 = arith.constant 0 : i32
    return %c0_i32, %c0_i32_0 : i32, i32
  }
  func.func @transform_4(%arg0: i32) -> (i32, i32) {
    %c0_i32 = arith.constant 0 : i32
    %c0_i32_0 = arith.constant 0 : i32
    %c0_i32_1 = arith.constant 0 : i32
    return %c0_i32, %c0_i32_0 : i32, i32
  }
  func.func @transform_5(%arg0: i32) -> (i32, i32) {
    %c0_i32 = arith.constant 0 : i32
    %c0_i32_0 = arith.constant 0 : i32
    %c0_i32_1 = arith.constant 0 : i32
    return %c0_i32, %c0_i32_0 : i32, i32
  }
  func.func @transform_6(%arg0: i32) -> (i32, i32) {
    %c0_i32 = arith.constant 0 : i32
    %c0_i32_0 = arith.constant 0 : i32
    %c0_i32_1 = arith.constant 0 : i32
    return %c0_i32, %c0_i32_0 : i32, i32
  }
  func.func @transform_7(%arg0: i32) -> (i32, i32) {
    %c0_i32 = arith.constant 0 : i32
    %c0_i32_0 = arith.constant 0 : i32
    return %arg0, %c0_i32 : i32, i32
  }
}

</mosaic_0001>

<llo_original>
// kernel: tpu_custom_call.1
$region0: #{tpu_custom_call.1}
  #allocation0 [shape = 'u32[]', space=smem, size = 0x4, offset = 0x4, fixed_abs, tag = 'smem constant byte address 0x4 - core index']
  #allocation1 [shape = 'u32[144,128]{1,0:T(1,128)}', space=vmem, size = 0x12000, scoped, tag = 'internal scratch']
  %s0 = inlined_call_operand.hbm [shape: f32[8,32], index: 0, kind: input, shape index: {}]
  %s1 = inlined_call_operand.hbm [shape: f32[32,64], index: 1, kind: input, shape index: {}]
  %s2 = inlined_call_operand.vmem [shape: f32[1,64], index: 2, kind: input, shape index: {}]
  %s3 = inlined_call_operand.hbm [shape: f32[64,64], index: 3, kind: input, shape index: {}]
  %s4 = inlined_call_operand.vmem [shape: f32[1,64], index: 4, kind: input, shape index: {}]
  %s5 = inlined_call_operand.hbm [shape: f32[64,128], index: 5, kind: input, shape index: {}]
  %s6 = inlined_call_operand.vmem [shape: f32[1,128], index: 6, kind: input, shape index: {}]
  %s7 = inlined_call_operand.hbm [shape: f32[8,128], index: 7, kind: output, shape index: {}]
  %s8 = sld [smem:[#allocation0]]
  $region54: #{tpu_custom_call.1} parent=0
    _
  %s10 = ssub.s32 1, %s8
  %s11 = scalar_select 0, %s10, %s8
  $region1: #{tpu_custom_call.1} parent=0
    #allocation2 [shape = 'u8[4096]{0}', space=vmem, size = 0x1000, scoped, tag = 'input window, operand 0, single buffered']
    #allocation3 [shape = 's32[1]{0}', space=sflag, size = 0x4, scoped, tag = 'scoped memory for tpu_custom_call.1']
    #allocation4 [shape = 's32[1]{0}', space=sflag, size = 0x4, scoped, tag = 'scoped memory for tpu_custom_call.1']
    #allocation5 [shape = 'u8[16384]{0}', space=vmem, size = 0x4000, scoped, tag = 'input window, operand 1, single buffered']
    #allocation6 [shape = 's32[1]{0}', space=sflag, size = 0x4, scoped, tag = 'scoped memory for tpu_custom_call.1']
    #allocation7 [shape = 'u8[32768]{0}', space=vmem, size = 0x8000, scoped, tag = 'input window, operand 3, single buffered']
    #allocation8 [shape = 'u8[32768]{0}', space=vmem, size = 0x8000, scoped, tag = 'input window, operand 5, single buffered']
    #allocation9 [shape = 's32[1]{0}', space=sflag, size = 0x4, scoped, tag = 'scoped memory for tpu_custom_call.1']
    #allocation10 [shape = 'u8[4096]{0}', space=vmem, size = 0x1000, scoped, tag = 'output window, operand 0, single buffered']
    %12 = vsyncpa [#allocation3], 0
    %13 = vsyncpa [#allocation6], 0
    %14 = vsyncpa [#allocation9], 0
    %15 = vsyncpa [#allocation4], 0
    // Predicated region
    $region2: #{tpu_custom_call.1} parent=1 // pred_check
      _
    $region3: #{tpu_custom_call.1} parent=1 // pred_check_branch
      %17 = sbr.rel (0) target = $region5
    $region4: #{tpu_custom_call.1} parent=1 // pred_region
      %s19 = ssub.s32 128, 128
      %20 = vsyncadd [#allocation3], %s19
      %s22 = sshll.u32 [#allocation2], 4
      %s23 = int_to_ptr.vmem [resolvable:$true] %s22
      %25 = dma.hbm_to_vmem [thread:$0]  %s0, 128, %s23, [#allocation3]
    $region5: #{tpu_custom_call.1} parent=1 // pred_fallthru
      _
    // Predicated region
    $region6: #{tpu_custom_call.1} parent=1 // pred_check
      _
    $region7: #{tpu_custom_call.1} parent=1 // pred_check_branch
      %27 = sbr.rel (0) target = $region9
    $region8: #{tpu_custom_call.1} parent=1 // pred_region
      %s29 = ssub.s32 512, 512
      %30 = vsyncadd [#allocation6], %s29
      %s31 = sshll.u32 [#allocation5], 4
      %s32 = int_to_ptr.vmem [resolvable:$true] %s31
      %37 = dma.hbm_to_vmem [thread:$0]  %s1, 512, %s32, [#allocation6], 128, 128, 8
    $region9: #{tpu_custom_call.1} parent=1 // pred_fallthru
      _
    // Predicated region
    $region10: #{tpu_custom_call.1} parent=1 // pred_check
      _
    $region11: #{tpu_custom_call.1} parent=1 // pred_check_branch
      %39 = sbr.rel (0) target = $region13
    $region12: #{tpu_custom_call.1} parent=1 // pred_region
      _
    $region13: #{tpu_custom_call.1} parent=1 // pred_fallthru
      _
    // Predicated region
    $region14: #{tpu_custom_call.1} parent=1 // pred_check
      _
    $region15: #{tpu_custom_call.1} parent=1 // pred_check_branch
      %41 = sbr.rel (0) target = $region17
    $region16: #{tpu_custom_call.1} parent=1 // pred_region
      %s43 = ssub.s32 1024, 1024
      %44 = vsyncadd [#allocation6], %s43
      %s45 = sshll.u32 [#allocation7], 4
      %s46 = int_to_ptr.vmem [resolvable:$true] %s45
      %51 = dma.hbm_to_vmem [thread:$0]  %s3, 1024, %s46, [#allocation6], 128, 128, 8
    $region17: #{tpu_custom_call.1} parent=1 // pred_fallthru
      _
    // Predicated region
    $region18: #{tpu_custom_call.1} parent=1 // pred_check
      _
    $region19: #{tpu_custom_call.1} parent=1 // pred_check_branch
      %53 = sbr.rel (0) target = $region21
    $region20: #{tpu_custom_call.1} parent=1 // pred_region
      _
    $region21: #{tpu_custom_call.1} parent=1 // pred_fallthru
      _
    // Predicated region
    $region22: #{tpu_custom_call.1} parent=1 // pred_check
      _
    $region23: #{tpu_custom_call.1} parent=1 // pred_check_branch
      %55 = sbr.rel (0) target = $region25
    $region24: #{tpu_custom_call.1} parent=1 // pred_region
      %s57 = ssub.s32 1024, 1024
      %58 = vsyncadd [#allocation9], %s57
      %s59 = sshll.u32 [#allocation8], 4
      %s60 = int_to_ptr.vmem [resolvable:$true] %s59
      %65 = dma.hbm_to_vmem [thread:$0]  %s5, 1024, %s60, [#allocation9], 128, 128, 8
    $region25: #{tpu_custom_call.1} parent=1 // pred_fallthru
      _
    // Predicated region
    $region26: #{tpu_custom_call.1} parent=1 // pred_check
      _
    $region27: #{tpu_custom_call.1} parent=1 // pred_check_branch
      %67 = sbr.rel (0) target = $region29
    $region28: #{tpu_custom_call.1} parent=1 // pred_region
      _
    $region29: #{tpu_custom_call.1} parent=1 // pred_fallthru
      _
    // Predicated region
    $region30: #{tpu_custom_call.1} parent=1 // pred_check
      _
    $region31: #{tpu_custom_call.1} parent=1 // pred_check_branch
      %69 = sbr.rel (0) target = $region33
    $region32: #{tpu_custom_call.1} parent=1 // pred_region
      %70 = dma.done [#allocation3], 128
    $region33: #{tpu_custom_call.1} parent=1 // pred_fallthru
      _
    // Predicated region
    $region34: #{tpu_custom_call.1} parent=1 // pred_check
      _
    $region35: #{tpu_custom_call.1} parent=1 // pred_check_branch
      %72 = sbr.rel (0) target = $region37
    $region36: #{tpu_custom_call.1} parent=1 // pred_region
      %73 = dma.done [#allocation6], 512
    $region37: #{tpu_custom_call.1} parent=1 // pred_fallthru
      _
    // Predicated region
    $region38: #{tpu_custom_call.1} parent=1 // pred_check
      _
    $region39: #{tpu_custom_call.1} parent=1 // pred_check_branch
      %75 = sbr.rel (0) target = $region41
    $region40: #{tpu_custom_call.1} parent=1 // pred_region
      %76 = dma.done [#allocation6], 1024
    $region41: #{tpu_custom_call.1} parent=1 // pred_fallthru
      _
    // Predicated region
    $region42: #{tpu_custom_call.1} parent=1 // pred_check
      _
    $region43: #{tpu_custom_call.1} parent=1 // pred_check_branch
      %78 = sbr.rel (0) target = $region45
    $region44: #{tpu_custom_call.1} parent=1 // pred_region
      %79 = dma.done [#allocation9], 1024
    $region45: #{tpu_custom_call.1} parent=1 // pred_fallthru
      _
    %v80 = vld [vmem:[#allocation2] sm:$0xff]
    %v81 = vld [vmem:[#allocation5] sm:$0xff]
    %v82 = vld [vmem:[#allocation5 + $0x8] sm:$0xff]
    %v83 = vld [vmem:[#allocation5 + $0x10] sm:$0xff]
    %v84 = vld [vmem:[#allocation5 + $0x18] sm:$0xff]
    %v85 = vld [vmem:[%s2] sm:$0x1]
    %v87 = vlaneseq
    %v88 = vshrl.u32 %v87, 7
    %v89 = vsub.s32 0, %v88
    %v90 = vrot.slane %v85, %v89
    %vm92 = vcmask 261120
    %v94 = vsel %vm92, %v80, 0
    %96 = vmatprep.subr.mxu0 0.0
    %97 = vmatpush1.msra.mxu0 %v81
    %98 = vmatprep.subr.mxu0 0.0
    %99 = vmatpush1.msra.mxu0 %v82
    %100 = vmatprep.subr.mxu0 0.0
    %101 = vmatpush1.msra.mxu0 %v83
    %102 = vmatprep.subr.mxu0 0.0
    %103 = vmatpush1.msra.mxu0 %v84
    %104 = vmatprep.subr.mxu0 0.0
    %105 = vmatpush1.msra.mxu0 0.0
    %106 = vmatprep.subr.mxu0 0.0
    %107 = vmatpush1.msra.mxu0 0.0
    %108 = vmatprep.subr.mxu0 0.0
    %109 = vmatpush1.msra.mxu0 0.0
    %110 = vmatprep.subr.mxu0 0.0
    %111 = vmatpush1.msra.mxu0 0.0
    %112 = vmatprep.subr.mxu0 0.0
    %113 = vmatpush1.msra.mxu0 0.0
    %114 = vmatprep.subr.mxu0 0.0
    %115 = vmatpush1.msra.mxu0 0.0
    %116 = vmatprep.subr.mxu0 0.0
    %117 = vmatpush1.msra.mxu0 0.0
    %118 = vmatprep.subr.mxu0 0.0
    %119 = vmatpush1.msra.mxu0 0.0
    %120 = vmatprep.subr.mxu0 0.0
    %121 = vmatpush1.msra.mxu0 0.0
    %122 = vmatprep.subr.mxu0 0.0
    %123 = vmatpush1.msra.mxu0 0.0
    %124 = vmatprep.subr.mxu0 0.0
    %125 = vmatpush1.msra.mxu0 0.0
    %126 = vmatprep.subr.mxu0 0.0
    %127 = vmatpush1.msra.mxu0 0.0
    %128 = vmatprep.subr.mxu0 0.0
    %129 = vmatpush1.msra.mxu0 0.0
    %130 = vmatprep.subr.mxu0 0.0
    %131 = vmatpush1.msra.mxu0 0.0
    %132 = vmatprep.subr.mxu0 0.0
    %133 = vmatpush1.msra.mxu0 0.0
    %134 = vmatprep.subr.mxu0 0.0
    %135 = vmatpush1.msra.mxu0 0.0
    %136 = vmatprep.subr.mxu0 0.0
    %137 = vmatpush1.msra.mxu0 0.0
    %138 = vmatprep.subr.mxu0 0.0
    %139 = vmatpush1.msra.mxu0 0.0
    %140 = vmatprep.subr.mxu0 0.0
    %141 = vmatpush1.msra.mxu0 0.0
    %142 = vmatprep.subr.mxu0 0.0
    %143 = vmatpush1.msra.mxu0 0.0
    %144 = vmatprep.subr.mxu0 0.0
    %145 = vmatpush1.msra.mxu0 0.0
    %146 = vmatprep.subr.mxu0 0.0
    %147 = vmatpush1.msra.mxu0 0.0
    %148 = vmatprep.subr.mxu0 0.0
    %149 = vmatpush1.msra.mxu0 0.0
    %150 = vmatprep.subr.mxu0 0.0
    %151 = vmatpush1.msra.mxu0 0.0
    %152 = vmatprep.subr.mxu0 0.0
    %153 = vmatpush1.msra.mxu0 0.0
    %154 = vmatprep.subr.mxu0 0.0
    %155 = vmatpush1.msra.mxu0 0.0
    %156 = vmatprep.subr.mxu0 0.0
    %157 = vmatpush1.msra.mxu0 0.0
    %158 = vmatprep.subr.mxu0 0.0
    %159 = vmatpush1.msra.mxu0 0.0
    %160 = vmatprep.mubr.f32.mxu0 0.0
    %161 = vmatmul.mubr.f32.gmra.mrb[0].mxu0 %v94
    %v162 = vpop.f32.mrb[0].mxu0
    %v163 = vadd.f32 %v90, %v162
    %v164 = vpop.f32.mrb[0].mxu0
    %165 = vdwg.mxu0
    %v166 = vsub.f32 0.0, %v163
    %v167 = vmul.f32 %v166, 1.442695
    %v168 = vpow.pop %v167
    %v169 = vadd.f32 %v168, 1.0
    %v170 = vrcp.pop %v169
    %v171 = vmul.f32 %v163, %v170
    %v172 = vld [vmem:[#allocation7] sm:$0xff]
    %v173 = vld [vmem:[#allocation7 + $0x8] sm:$0xff]
    %v174 = vld [vmem:[#allocation7 + $0x10] sm:$0xff]
    %v175 = vld [vmem:[#allocation7 + $0x18] sm:$0xff]
    %v176 = vld [vmem:[#allocation7 + $0x20] sm:$0xff]
    %v177 = vld [vmem:[#allocation7 + $0x28] sm:$0xff]
    %v178 = vld [vmem:[#allocation7 + $0x30] sm:$0xff]
    %v179 = vld [vmem:[#allocation7 + $0x38] sm:$0xff]
    %v180 = vld [vmem:[%s4] sm:$0x1]
    %v182 = vlaneseq
    %v183 = vshrl.u32 %v182, 7
    %v184 = vsub.s32 0, %v183
    %v185 = vrot.slane %v180, %v184
    %vm187 = vcmask 523264
    %v189 = vsel %vm187, %v171, 0
    %191 = vmatprep.subr.mxu0 0.0
    %192 = vmatpush1.msra.mxu0 %v172
    %193 = vmatprep.subr.mxu0 0.0
    %194 = vmatpush1.msra.mxu0 %v173
    %195 = vmatprep.subr.mxu0 0.0
    %196 = vmatpush1.msra.mxu0 %v174
    %197 = vmatprep.subr.mxu0 0.0
    %198 = vmatpush1.msra.mxu0 %v175
    %199 = vmatprep.subr.mxu0 0.0
    %200 = vmatpush1.msra.mxu0 %v176
    %201 = vmatprep.subr.mxu0 0.0
    %202 = vmatpush1.msra.mxu0 %v177
    %203 = vmatprep.subr.mxu0 0.0
    %204 = vmatpush1.msra.mxu0 %v178
    %205 = vmatprep.subr.mxu0 0.0
    %206 = vmatpush1.msra.mxu0 %v179
    %207 = vmatprep.subr.mxu0 0.0
    %208 = vmatpush1.msra.mxu0 0.0
    %209 = vmatprep.subr.mxu0 0.0
    %210 = vmatpush1.msra.mxu0 0.0
    %211 = vmatprep.subr.mxu0 0.0
    %212 = vmatpush1.msra.mxu0 0.0
    %213 = vmatprep.subr.mxu0 0.0
    %214 = vmatpush1.msra.mxu0 0.0
    %215 = vmatprep.subr.mxu0 0.0
    %216 = vmatpush1.msra.mxu0 0.0
    %217 = vmatprep.subr.mxu0 0.0
    %218 = vmatpush1.msra.mxu0 0.0
    %219 = vmatprep.subr.mxu0 0.0
    %220 = vmatpush1.msra.mxu0 0.0
    %221 = vmatprep.subr.mxu0 0.0
    %222 = vmatpush1.msra.mxu0 0.0
    %223 = vmatprep.subr.mxu0 0.0
    %224 = vmatpush1.msra.mxu0 0.0
    %225 = vmatprep.subr.mxu0 0.0
    %226 = vmatpush1.msra.mxu0 0.0
    %227 = vmatprep.subr.mxu0 0.0
    %228 = vmatpush1.msra.mxu0 0.0
    %229 = vmatprep.subr.mxu0 0.0
    %230 = vmatpush1.msra.mxu0 0.0
    %231 = vmatprep.subr.mxu0 0.0
    %232 = vmatpush1.msra.mxu0 0.0
    %233 = vmatprep.subr.mxu0 0.0
    %234 = vmatpush1.msra.mxu0 0.0
    %235 = vmatprep.subr.mxu0 0.0
    %236 = vmatpush1.msra.mxu0 0.0
    %237 = vmatprep.subr.mxu0 0.0
    %238 = vmatpush1.msra.mxu0 0.0
    %239 = vmatprep.subr.mxu0 0.0
    %240 = vmatpush1.msra.mxu0 0.0
    %241 = vmatprep.subr.mxu0 0.0
    %242 = vmatpush1.msra.mxu0 0.0
    %243 = vmatprep.subr.mxu0 0.0
    %244 = vmatpush1.msra.mxu0 0.0
    %245 = vmatprep.subr.mxu0 0.0
    %246 = vmatpush1.msra.mxu0 0.0
    %247 = vmatprep.subr.mxu0 0.0
    %248 = vmatpush1.msra.mxu0 0.0
    %249 = vmatprep.subr.mxu0 0.0
    %250 = vmatpush1.msra.mxu0 0.0
    %251 = vmatprep.subr.mxu0 0.0
    %252 = vmatpush1.msra.mxu0 0.0
    %253 = vmatprep.subr.mxu0 0.0
    %254 = vmatpush1.msra.mxu0 0.0
    %255 = vmatprep.mubr.f32.mxu0 0.0
    %256 = vmatmul.mubr.f32.gmra.mrb[0].mxu0 %v189
    %v257 = vpop.f32.mrb[0].mxu0
    %v258 = vadd.f32 %v185, %v257
    %v259 = vpop.f32.mrb[0].mxu0
    %260 = vdwg.mxu0
    %v261 = vsub.f32 0.0, %v258
    %v262 = vmul.f32 %v261, 1.442695
    %v263 = vpow.pop %v262
    %v264 = vadd.f32 %v263, 1.0
    %v265 = vrcp.pop %v264
    %v266 = vmul.f32 %v258, %v265
    %v267 = vld [vmem:[#allocation8] sm:$0xff]
    %v268 = vld [vmem:[#allocation8 + $0x8] sm:$0xff]
    %v269 = vld [vmem:[#allocation8 + $0x10] sm:$0xff]
    %v270 = vld [vmem:[#allocation8 + $0x18] sm:$0xff]
    %v271 = vld [vmem:[#allocation8 + $0x20] sm:$0xff]
    %v272 = vld [vmem:[#allocation8 + $0x28] sm:$0xff]
    %v273 = vld [vmem:[#allocation8 + $0x30] sm:$0xff]
    %v274 = vld [vmem:[#allocation8 + $0x38] sm:$0xff]
    %v275 = vld [vmem:[%s6] sm:$0x1]
    %v277 = vlaneseq
    %v278 = vshrl.u32 %v277, 7
    %v279 = vsub.s32 0, %v278
    %v280 = vrot.slane %v275, %v279
    %v283 = vsel %vm187, %v266, 0
    %285 = vmatprep.subr.mxu0 0.0
    %286 = vmatpush1.msra.mxu0 %v267
    %287 = vmatprep.subr.mxu0 0.0
    %288 = vmatpush1.msra.mxu0 %v268
    %289 = vmatprep.subr.mxu0 0.0
    %290 = vmatpush1.msra.mxu0 %v269
    %291 = vmatprep.subr.mxu0 0.0
    %292 = vmatpush1.msra.mxu0 %v270
    %293 = vmatprep.subr.mxu0 0.0
    %294 = vmatpush1.msra.mxu0 %v271
    %295 = vmatprep.subr.mxu0 0.0
    %296 = vmatpush1.msra.mxu0 %v272
    %297 = vmatprep.subr.mxu0 0.0
    %298 = vmatpush1.msra.mxu0 %v273
    %299 = vmatprep.subr.mxu0 0.0
    %300 = vmatpush1.msra.mxu0 %v274
    %301 = vmatprep.subr.mxu0 0.0
    %302 = vmatpush1.msra.mxu0 0.0
    %303 = vmatprep.subr.mxu0 0.0
    %304 = vmatpush1.msra.mxu0 0.0
    %305 = vmatprep.subr.mxu0 0.0
    %306 = vmatpush1.msra.mxu0 0.0
    %307 = vmatprep.subr.mxu0 0.0
    %308 = vmatpush1.msra.mxu0 0.0
    %309 = vmatprep.subr.mxu0 0.0
    %310 = vmatpush1.msra.mxu0 0.0
    %311 = vmatprep.subr.mxu0 0.0
    %312 = vmatpush1.msra.mxu0 0.0
    %313 = vmatprep.subr.mxu0 0.0
    %314 = vmatpush1.msra.mxu0 0.0
    %315 = vmatprep.subr.mxu0 0.0
    %316 = vmatpush1.msra.mxu0 0.0
    %317 = vmatprep.subr.mxu0 0.0
    %318 = vmatpush1.msra.mxu0 0.0
    %319 = vmatprep.subr.mxu0 0.0
    %320 = vmatpush1.msra.mxu0 0.0
    %321 = vmatprep.subr.mxu0 0.0
    %322 = vmatpush1.msra.mxu0 0.0
    %323 = vmatprep.subr.mxu0 0.0
    %324 = vmatpush1.msra.mxu0 0.0
    %325 = vmatprep.subr.mxu0 0.0
    %326 = vmatpush1.msra.mxu0 0.0
    %327 = vmatprep.subr.mxu0 0.0
    %328 = vmatpush1.msra.mxu0 0.0
    %329 = vmatprep.subr.mxu0 0.0
    %330 = vmatpush1.msra.mxu0 0.0
    %331 = vmatprep.subr.mxu0 0.0
    %332 = vmatpush1.msra.mxu0 0.0
    %333 = vmatprep.subr.mxu0 0.0
    %334 = vmatpush1.msra.mxu0 0.0
    %335 = vmatprep.subr.mxu0 0.0
    %336 = vmatpush1.msra.mxu0 0.0
    %337 = vmatprep.subr.mxu0 0.0
    %338 = vmatpush1.msra.mxu0 0.0
    %339 = vmatprep.subr.mxu0 0.0
    %340 = vmatpush1.msra.mxu0 0.0
    %341 = vmatprep.subr.mxu0 0.0
    %342 = vmatpush1.msra.mxu0 0.0
    %343 = vmatprep.subr.mxu0 0.0
    %344 = vmatpush1.msra.mxu0 0.0
    %345 = vmatprep.subr.mxu0 0.0
    %346 = vmatpush1.msra.mxu0 0.0
    %347 = vmatprep.subr.mxu0 0.0
    %348 = vmatpush1.msra.mxu0 0.0
    %349 = vmatprep.mubr.f32.mxu0 0.0
    %350 = vmatmul.mubr.f32.gmra.mrb[0].mxu0 %v283
    %v351 = vpop.f32.mrb[0].mxu0
    %v352 = vadd.f32 %v280, %v351
    %v353 = vpop.f32.mrb[0].mxu0
    %354 = vdwg.mxu0
    %355 = vst [vmem:[#allocation10] sm:$0xff] %v352
    // Predicated region
    $region46: #{tpu_custom_call.1} parent=1 // pred_check
      _
    $region47: #{tpu_custom_call.1} parent=1 // pred_check_branch
      %357 = sbr.rel (0) target = $region49
    $region48: #{tpu_custom_call.1} parent=1 // pred_region
      %s359 = ssub.s32 128, 128
      %360 = vsyncadd [#allocation4], %s359
      %s362 = sshll.u32 [#allocation10], 4
      %s363 = int_to_ptr.vmem [resolvable:$true] %s362
      %365 = dma.vmem_to_hbm [thread:$0]  %s363, 128, %s7, [#allocation4]
    $region49: #{tpu_custom_call.1} parent=1 // pred_fallthru
      _
    // Predicated region
    $region50: #{tpu_custom_call.1} parent=1 // pred_check
      _
    $region51: #{tpu_custom_call.1} parent=1 // pred_check_branch
      %367 = sbr.rel (0) target = $region53
    $region52: #{tpu_custom_call.1} parent=1 // pred_region
      %368 = dma.done [#allocation4], 128
    $region53: #{tpu_custom_call.1} parent=1 // pred_fallthru
      _
    %369 = vsyncpa [#allocation3], 1
    %370 = vsyncpa [#allocation6], 1
    %371 = vsyncpa [#allocation9], 1
    %372 = vsyncpa [#allocation4], 1

</llo_original>
